<compile_context>
chip_gen: v7x
topology: tpu7x:2x2x1
jax: 0.10.0
libtpu: 0.0.40
codegen_flags: <defaults>
</compile_context>

<pallas_src>
import functools

import jax
import jax.numpy as jnp
from jax.experimental import pallas as pl
from jax.experimental.pallas import tpu as pltpu


def _llama_mlp_kernel(x_ref, wgu_ref, wd_ref, o_ref, acc_ref, *, ti):
    # Grid = (token tiles i, intermediate tiles j). j is the reduction axis:
    # it must stay innermost and marked "arbitrary" (acc_ref is carried across it).
    j = pl.program_id(1)

    @pl.when(j == 0)
    def _():
        acc_ref[...] = jnp.zeros_like(acc_ref)

    # Single merged gate+up matmul: [tm, H] @ [H, 2*ti] -> [tm, 2*ti], f32 acc.
    gu = jnp.dot(x_ref[...], wgu_ref[...], preferred_element_type=jnp.float32)
    g = gu[:, :ti]
    u = gu[:, ti:]

    # SiluAndMul in f32; cast once for the down-proj MXU pass.
    h = (g * jax.nn.sigmoid(g)) * u

    # Partial down projection, accumulated over intermediate tiles -> [tm, H].
    acc_ref[...] += jnp.dot(
        h.astype(wd_ref.dtype), wd_ref[...], preferred_element_type=jnp.float32
    )

    @pl.when(j == pl.num_programs(1) - 1)
    def _():
        o_ref[...] = acc_ref[...].astype(o_ref.dtype)


def prepare_gate_up(w_gate, w_up, ti):
    """Interleave gate/up per-ti-tile so merged block j = [gate_tile_j | up_tile_j].

    In a real model this layout is produced once at weight-load time.
    """
    H, I = w_gate.shape
    assert I % ti == 0
    nj = I // ti
    merged = jnp.concatenate(
        [w_gate.reshape(H, nj, ti), w_up.reshape(H, nj, ti)], axis=2
    )
    return merged.reshape(H, 2 * I)


def _vmem_estimate(tm, ti, H, dsize):
    # double-buffered x, merged gate_up tile, down tile, out tile + f32 accumulator
    return 2 * (tm * H + H * 2 * ti + ti * H + tm * H) * dsize + tm * H * 4


def _pick_tiles(T, H, I, dsize, vmem_budget):
    tm_candidates = (512, 256, 128, 64, 32, 16)
    ti_candidates = (512, 256, 128)
    tm = next((t for t in tm_candidates if t <= T and T % t == 0), T)
    ti = next((t for t in ti_candidates if t <= I and I % t == 0), I)
    # Shrink ti first (preserve token-tile MXU utilization), then tm, to fit VMEM.
    while (
        _vmem_estimate(tm, ti, H, dsize) > vmem_budget
        and ti > 128
        and ti % 2 == 0
        and I % (ti // 2) == 0
    ):
        ti //= 2
    while (
        _vmem_estimate(tm, ti, H, dsize) > vmem_budget
        and tm > 16
        and tm % 2 == 0
        and T % (tm // 2) == 0
    ):
        tm //= 2
    return tm, ti


def llama_mlp(x, w_gate, w_up, w_down, *, tm=None, ti=None,
              vmem_budget_bytes=48 * 2**20):
    T, H = x.shape
    I = w_gate.shape[1]
    assert w_gate.shape == (H, I) and w_up.shape == (H, I) and w_down.shape == (I, H)

    dsize = jnp.dtype(x.dtype).itemsize
    auto_tm, auto_ti = _pick_tiles(T, H, I, dsize, vmem_budget_bytes)
    tm = auto_tm if tm is None else tm
    ti = auto_ti if ti is None else ti
    assert T % tm == 0 and I % ti == 0
    if x.dtype == jnp.bfloat16:
        assert tm % 16 == 0, "bf16 token tile must be a multiple of 16"

    w_gu = prepare_gate_up(w_gate, w_up, ti)  # TODO(synk): precompute at load time.

    grid = (T // tm, I // ti)

    est_bytes = _vmem_estimate(tm, ti, H, dsize)
    # Keep the scoped-VMEM request <= 64 MiB so the same config is valid on v7x.
    vmem_limit = int(min(64 * 2**20, max(32 * 2**20, est_bytes * 5 // 4)))

    cost = pl.CostEstimate(
        flops=6 * T * H * I,                      # 2*T*H*2I (gate_up) + 2*T*I*H (down)
        transcendentals=T * I,                    # sigmoid
        bytes_accessed=(T * H + 3 * H * I + T * H) * dsize,
    )

    kernel = functools.partial(_llama_mlp_kernel, ti=ti)

    return pl.pallas_call(
        kernel,
        out_shape=jax.ShapeDtypeStruct((T, H), x.dtype),
        grid_spec=pltpu.PrefetchScalarGridSpec(
            num_scalar_prefetch=0,
            grid=grid,
            in_specs=[
                pl.BlockSpec((tm, H), lambda i, j: (i, 0)),       # x tile
                pl.BlockSpec((H, 2 * ti), lambda i, j: (0, j)),   # merged gate|up tile
                pl.BlockSpec((ti, H), lambda i, j: (j, 0)),       # W_down tile
            ],
            out_specs=pl.BlockSpec((tm, H), lambda i, j: (i, 0)),
            scratch_shapes=[pltpu.VMEM((tm, H), jnp.float32)],
        ),
        compiler_params=pltpu.CompilerParams(
            dimension_semantics=("parallel", "arbitrary"),
            vmem_limit_bytes=vmem_limit,
        ),
        cost_estimate=cost,
    )(x, w_gu, w_down)


def llama_mlp_ref(x, w_gate, w_up, w_down):
    xf = x.astype(jnp.float32)
    g = xf @ w_gate.astype(jnp.float32)
    u = xf @ w_up.astype(jnp.float32)
    h = (g * jax.nn.sigmoid(g)) * u
    return (h @ w_down.astype(jnp.float32)).astype(x.dtype)


if __name__ == "__main__":
    # Small LlamaMLP: hidden_size=256, intermediate_size=1024, 64 tokens, no bias.
    T, H, I = 64, 256, 1024
    key = jax.random.PRNGKey(0)
    kx, kg, ku, kd = jax.random.split(key, 4)

    x = jax.random.normal(kx, (T, H), dtype=jnp.float32)
    # Deterministic synthetic weights (module __init__ only defines shapes).
    w_gate = jax.random.normal(kg, (H, I), dtype=jnp.float32) * 0.02
    w_up = jax.random.normal(ku, (H, I), dtype=jnp.float32) * 0.02
    w_down = jax.random.normal(kd, (I, H), dtype=jnp.float32) * 0.02

    # f32 run; force ti=256 so the accumulator spans 4 intermediate tiles.
    out = jax.block_until_ready(llama_mlp(x, w_gate, w_up, w_down, ti=256))
    ref = llama_mlp_ref(x, w_gate, w_up, w_down)
    assert out.shape == (T, H)
    assert jnp.allclose(out, ref, atol=1e-4, rtol=1e-4), "f32 mismatch vs reference"

    # bf16 run (production dtype): auto tiles, f32 accumulation inside the kernel.
    xb = x.astype(jnp.bfloat16)
    wgb, wub, wdb = (w.astype(jnp.bfloat16) for w in (w_gate, w_up, w_down))
    out_b = jax.block_until_ready(llama_mlp(xb, wgb, wub, wdb))
    ref_b = llama_mlp_ref(xb, wgb, wub, wdb).astype(jnp.float32)
    err = jnp.max(jnp.abs(out_b.astype(jnp.float32) - ref_b))
    scale = jnp.max(jnp.abs(ref_b)) + 1e-6
    assert out_b.dtype == jnp.bfloat16
    assert bool(err <= 5e-2 * scale), "bf16 mismatch vs reference"

    print("KERNEL_OK")
</pallas_src>

<mosaic_0001>
module attributes {stable_mosaic.version = 11 : i64} {
  func.func @_llama_mlp_kernel(%arg0: i32, %arg1: i32, %arg2: memref<64x256xf32, #tpu.memory_space<vmem>>, %arg3: memref<256x512xf32, #tpu.memory_space<vmem>>, %arg4: memref<256x256xf32, #tpu.memory_space<vmem>>, %arg5: memref<64x256xf32, #tpu.memory_space<vmem>>, %arg6: memref<64x256xf32, #tpu.memory_space<vmem>>) attributes {dimension_semantics = [#tpu.dimension_semantics<parallel>, #tpu.dimension_semantics<arbitrary>], iteration_bounds = array<i64: 1, 4>, scalar_prefetch = 0 : i64, scratch_operands = 1 : i64, tpu.core_type = #tpu.core_type<tc>, window_params = [{transform_indices = @transform_0, window_bounds = array<i64: 64, 256>}, {transform_indices = @transform_1, window_bounds = array<i64: 256, 512>}, {transform_indices = @transform_2, window_bounds = array<i64: 256, 256>}, {transform_indices = @transform_3, window_bounds = array<i64: 64, 256>}]} {
    %c0_i32 = arith.constant 0 : i32
    %0 = arith.cmpi eq, %arg1, %c0_i32 : i32
    %1 = arith.extui %0 : i1 to i32
    %c0_i32_0 = arith.constant 0 : i32
    %2 = arith.cmpi ne, %1, %c0_i32_0 : i32
    scf.if %2 {
      %cst_13 = arith.constant 0.000000e+00 : f32
      %23 = vector.broadcast %cst_13 : f32 to vector<64x256xf32>
      %c0_14 = arith.constant 0 : index
      %c0_15 = arith.constant 0 : index
      %24 = vector.load %arg6[%c0_14, %c0_15] : memref<64x256xf32, #tpu.memory_space<vmem>>, vector<64x256xf32>
      tpu.vector_store %arg6[%c0_14, %c0_15], %23 {strides = array<i32>} : memref<64x256xf32, #tpu.memory_space<vmem>>, vector<64x256xf32>,
    } else {
    }
    %c0 = arith.constant 0 : index
    %c0_1 = arith.constant 0 : index
    %3 = vector.load %arg2[%c0, %c0_1] : memref<64x256xf32, #tpu.memory_space<vmem>>, vector<64x256xf32>
    %c0_2 = arith.constant 0 : index
    %c0_3 = arith.constant 0 : index
    %4 = vector.load %arg3[%c0_2, %c0_3] : memref<256x512xf32, #tpu.memory_space<vmem>>, vector<256x512xf32>
    %cst = arith.constant dense<0.000000e+00> : vector<64x512xf32>
    %5 = tpu.matmul %3, %4, %cst {dimension_numbers = #tpu.dot_dimension_numbers<[1], [0], [0], [1], [0, 0, 1, 1], [], []>} : vector<64x256xf32>, vector<256x512xf32>, vector<64x512xf32> -> vector<64x512xf32>
    %6 = vector.extract_strided_slice %5 {offsets = [0, 0], sizes = [64, 256], strides = [1, 1]} : vector<64x512xf32> to vector<64x256xf32>
    %7 = vector.extract_strided_slice %5 {offsets = [0, 256], sizes = [64, 256], strides = [1, 1]} : vector<64x512xf32> to vector<64x256xf32>
    %8 = arith.negf %6 : vector<64x256xf32>
    %9 = math.exp %8 : vector<64x256xf32>
    %cst_4 = arith.constant 1.000000e+00 : f32
    %10 = vector.broadcast %cst_4 : f32 to vector<64x256xf32>
    %11 = arith.addf %10, %9 : vector<64x256xf32>
    %12 = arith.divf %10, %11 : vector<64x256xf32>
    %13 = arith.mulf %6, %12 : vector<64x256xf32>
    %14 = arith.mulf %13, %7 : vector<64x256xf32>
    %c0_5 = arith.constant 0 : index
    %c0_6 = arith.constant 0 : index
    %15 = vector.load %arg6[%c0_5, %c0_6] : memref<64x256xf32, #tpu.memory_space<vmem>>, vector<64x256xf32>
    %c0_7 = arith.constant 0 : index
    %c0_8 = arith.constant 0 : index
    %16 = vector.load %arg4[%c0_7, %c0_8] : memref<256x256xf32, #tpu.memory_space<vmem>>, vector<256x256xf32>
    %cst_9 = arith.constant dense<0.000000e+00> : vector<64x256xf32>
    %17 = tpu.matmul %14, %16, %cst_9 {dimension_numbers = #tpu.dot_dimension_numbers<[1], [0], [0], [1], [0, 0, 1, 1], [], []>} : vector<64x256xf32>, vector<256x256xf32>, vector<64x256xf32> -> vector<64x256xf32>
    %18 = arith.addf %15, %17 : vector<64x256xf32>
    %c0_10 = arith.constant 0 : index
    %c0_11 = arith.constant 0 : index
    %19 = vector.load %arg6[%c0_10, %c0_11] : memref<64x256xf32, #tpu.memory_space<vmem>>, vector<64x256xf32>
    tpu.vector_store %arg6[%c0_10, %c0_11], %18 {strides = array<i32>} : memref<64x256xf32, #tpu.memory_space<vmem>>, vector<64x256xf32>,
    %c3_i32 = arith.constant 3 : i32
    %20 = arith.cmpi eq, %arg1, %c3_i32 : i32
    %21 = arith.extui %20 : i1 to i32
    %c0_i32_12 = arith.constant 0 : i32
    %22 = arith.cmpi ne, %21, %c0_i32_12 : i32
    scf.if %22 {
      %c0_13 = arith.constant 0 : index
      %c0_14 = arith.constant 0 : index
      %23 = vector.load %arg6[%c0_13, %c0_14] : memref<64x256xf32, #tpu.memory_space<vmem>>, vector<64x256xf32>
      %c0_15 = arith.constant 0 : index
      %c0_16 = arith.constant 0 : index
      %24 = vector.load %arg5[%c0_15, %c0_16] : memref<64x256xf32, #tpu.memory_space<vmem>>, vector<64x256xf32>
      tpu.vector_store %arg5[%c0_15, %c0_16], %23 {strides = array<i32>} : memref<64x256xf32, #tpu.memory_space<vmem>>, vector<64x256xf32>,
    } else {
    }
    return
  }
  func.func @transform_0(%arg0: i32, %arg1: i32) -> (i32, i32) {
    %c0_i32 = arith.constant 0 : i32
    %c0_i32_0 = arith.constant 0 : i32
    return %arg0, %c0_i32 : i32, i32
  }
  func.func @transform_1(%arg0: i32, %arg1: i32) -> (i32, i32) {
    %c0_i32 = arith.constant 0 : i32
    %c0_i32_0 = arith.constant 0 : i32
    return %c0_i32, %arg1 : i32, i32
  }
  func.func @transform_2(%arg0: i32, %arg1: i32) -> (i32, i32) {
    %c0_i32 = arith.constant 0 : i32
    %c0_i32_0 = arith.constant 0 : i32
    return %arg1, %c0_i32 : i32, i32
  }
  func.func @transform_3(%arg0: i32, %arg1: i32) -> (i32, i32) {
    %c0_i32 = arith.constant 0 : i32
    %c0_i32_0 = arith.constant 0 : i32
    return %arg0, %c0_i32 : i32, i32
  }
}

</mosaic_0001>

<llo_original>
// kernel: tpu_custom_call.1
$region0: #{tpu_custom_call.1}
  #allocation0 [shape = 'u32[]', space=smem, size = 0x4, offset = 0x4, fixed_abs, tag = 'smem constant byte address 0x4 - core index']
  #allocation1 [shape = 'u32[144,128]{1,0:T(1,128)}', space=vmem, size = 0x12000, scoped, tag = 'internal scratch']
  #allocation2 [shape = 'f32[64,256]{1,0:T(8,128)}', space=vmem, size = 0x10000, scoped, tag = 'scratch operand']
  %s0 = inlined_call_operand.hbm [shape: f32[64,256], index: 0, kind: input, shape index: {}]
  %s1 = inlined_call_operand.hbm [shape: f32[256,2048], index: 1, kind: input, shape index: {}]
  %s2 = inlined_call_operand.hbm [shape: f32[1024,256], index: 2, kind: input, shape index: {}]
  %s3 = inlined_call_operand.hbm [shape: f32[64,256], index: 3, kind: output, shape index: {}]
  %s4 = sld [smem:[#allocation0]]
  $region65: #{tpu_custom_call.1} parent=0
    _
  %s6 = ssub.s32 1, %s4
  %s7 = scalar_select 0, %s6, %s4
  $region1: #{tpu_custom_call.1} parent=0
    #allocation3 [shape = 'u8[65536]{0}', space=vmem, size = 0x10000, scoped, tag = 'input window, operand 0, single buffered']
    #allocation4 [shape = 's32[2]{0}', space=sflag, size = 0x8, scoped, tag = 'scoped memory for tpu_custom_call.1']
    #allocation5 [shape = 's32[2]{0}', space=sflag, size = 0x8, scoped, tag = 'scoped memory for tpu_custom_call.1']
    #allocation6 [shape = 'u8[1048576]{0}', space=vmem, size = 0x100000, scoped, tag = 'input window, operand 1']
    #allocation7 [shape = 's32[2]{0}', space=sflag, size = 0x8, scoped, tag = 'scoped memory for tpu_custom_call.1']
    #allocation8 [shape = 'u8[524288]{0}', space=vmem, size = 0x80000, scoped, tag = 'input window, operand 2']
    #allocation9 [shape = 'u8[65536]{0}', space=vmem, size = 0x10000, scoped, tag = 'output window, operand 0, single buffered']
    %8 = vsyncpa [#allocation4], 0
    %9 = vsyncpa [#allocation7], 0
    %s10 = scalar_lea.sflag [#allocation7], 1
    %11 = vsyncpa %s10, 0
    %12 = vsyncpa [#allocation5], 0
    loop: start=0, step=1, limit=6
    $region2: #{tpu_custom_call.1} parent=1 // loop_pre_header
      _
    $region3: #{tpu_custom_call.1} parent=1 // loop_header
      %s14 = sphi 0, %s18
      %p15 = scmp.ge.s32.totalorder %s14, 6
      %s21 = sphi 0, %s33
      %s22 = sphi 0, %s29
      %s23 = sphi 0, %s21
      %s24 = sphi 0, %s22
      %s25 = sphi 0, %s23
      %s26 = sphi 0, %s24
      %s36 = sphi 0, %s38
      %s39 = sphi 0, %s36
      %s40 = sphi 0, %s39
      %s56 = sphi 0, %s40
      %s62 = sphi 0, %s64
      %s65 = sphi 0, %s62
      %s66 = sphi 0, %s65
      %s82 = sphi 0, %s66
      %s88 = sphi 0, %s90
      %s91 = sphi 0, %s88
      %s92 = sphi 0, %s91
      %s108 = sphi 0, %s92
      %s114 = sphi 0, %s116
      %s117 = sphi 0, %s114
      %s118 = sphi 0, %s117
      %s134 = sphi 0, %s118
    $region4: #{tpu_custom_call.1} parent=1 // loop_header_branch
      %17 = sbr.rel (%p15) target = $region8
    $region5: #{tpu_custom_call.1} parent=1 // loop_body
      %s19 = ssub.s32 %s14, 1
      %s20 = ssub.s32 %s14, 2
      %s27 = sadd.s32 1, %s22
      %p28 = scmp.ge.s32.totalorder %s27, 4
      %s29 = scalar_select %p28, 0, %s27
      %s30 = sadd.s32 1, %s21
      %s31 = scalar_select %p28, %s30, %s21
      %p32 = scmp.ge.s32.totalorder %s31, 1
      %s33 = scalar_select %p32, 0, %s31
      %s34 = ssub.s32 %s21, %s33
      %p35 = scmp.eq.s32.totalorder %s34, 0
      %s37 = sadd.s32 %s36, 1
      %s38 = scalar_select %p35, %s36, %s37
      %p41 = pneg %p35
      %p42 = scmp.eq.s32.totalorder %s14, 3
      %p43 = por %p41, %p42
      %p44 = scmp.ne.s32.totalorder %s36, %s39
      %p45 = scmp.eq.s32.totalorder %s14, 0
      %p46 = por %p44, %p45
      %p47 = scmp.ne.s32.totalorder %s36, %s39
      %p48 = scmp.eq.s32.totalorder %s19, 3
      %p49 = por %p47, %p48
      %p50 = scmp.ne.s32.totalorder %s39, %s40
      %p51 = scmp.eq.s32.totalorder %s19, 0
      %p52 = por %p50, %p51
      %p53 = scmp.ne.s32.totalorder %s39, %s40
      %p54 = scmp.eq.s32.totalorder %s20, 3
      %p55 = por %p53, %p54
      %p57 = scmp.ne.s32.totalorder %s40, %s56
      %p58 = scmp.eq.s32.totalorder %s20, 0
      %p59 = por %p57, %p58
      %s60 = ssub.s32 %s22, %s29
      %p61 = scmp.eq.s32.totalorder %s60, 0
      %s63 = sadd.s32 %s62, 1
      %s64 = scalar_select %p61, %s62, %s63
      %p67 = pneg %p61
      %p68 = scmp.eq.s32.totalorder %s14, 3
      %p69 = por %p67, %p68
      %p70 = scmp.ne.s32.totalorder %s62, %s65
      %p71 = scmp.eq.s32.totalorder %s14, 0
      %p72 = por %p70, %p71
      %p73 = scmp.ne.s32.totalorder %s62, %s65
      %p74 = scmp.eq.s32.totalorder %s19, 3
      %p75 = por %p73, %p74
      %p76 = scmp.ne.s32.totalorder %s65, %s66
      %p77 = scmp.eq.s32.totalorder %s19, 0
      %p78 = por %p76, %p77
      %p79 = scmp.ne.s32.totalorder %s65, %s66
      %p80 = scmp.eq.s32.totalorder %s20, 3
      %p81 = por %p79, %p80
      %p83 = scmp.ne.s32.totalorder %s66, %s82
      %p84 = scmp.eq.s32.totalorder %s20, 0
      %p85 = por %p83, %p84
      %s86 = ssub.s32 %s22, %s29
      %p87 = scmp.eq.s32.totalorder %s86, 0
      %s89 = sadd.s32 %s88, 1
      %s90 = scalar_select %p87, %s88, %s89
      %p93 = pneg %p87
      %p94 = scmp.eq.s32.totalorder %s14, 3
      %p95 = por %p93, %p94
      %p96 = scmp.ne.s32.totalorder %s88, %s91
      %p97 = scmp.eq.s32.totalorder %s14, 0
      %p98 = por %p96, %p97
      %p99 = scmp.ne.s32.totalorder %s88, %s91
      %p100 = scmp.eq.s32.totalorder %s19, 3
      %p101 = por %p99, %p100
      %p102 = scmp.ne.s32.totalorder %s91, %s92
      %p103 = scmp.eq.s32.totalorder %s19, 0
      %p104 = por %p102, %p103
      %p105 = scmp.ne.s32.totalorder %s91, %s92
      %p106 = scmp.eq.s32.totalorder %s20, 3
      %p107 = por %p105, %p106
      %p109 = scmp.ne.s32.totalorder %s92, %s108
      %p110 = scmp.eq.s32.totalorder %s20, 0
      %p111 = por %p109, %p110
      %s112 = ssub.s32 %s21, %s33
      %p113 = scmp.eq.s32.totalorder %s112, 0
      %s115 = sadd.s32 %s114, 1
      %s116 = scalar_select %p113, %s114, %s115
      %p119 = pneg %p113
      %p120 = scmp.eq.s32.totalorder %s14, 3
      %p121 = por %p119, %p120
      %p122 = scmp.ne.s32.totalorder %s114, %s117
      %p123 = scmp.eq.s32.totalorder %s14, 0
      %p124 = por %p122, %p123
      %p125 = scmp.ne.s32.totalorder %s114, %s117
      %p126 = scmp.eq.s32.totalorder %s19, 3
      %p127 = por %p125, %p126
      %p128 = scmp.ne.s32.totalorder %s117, %s118
      %p129 = scmp.eq.s32.totalorder %s19, 0
      %p130 = por %p128, %p129
      %p131 = scmp.ne.s32.totalorder %s117, %s118
      %p132 = scmp.eq.s32.totalorder %s20, 3
      %p133 = por %p131, %p132
      %p135 = scmp.ne.s32.totalorder %s118, %s134
      %p136 = scmp.eq.s32.totalorder %s20, 0
      %p137 = por %p135, %p136
      %p138 = scmp.le.s32.totalorder 1, %s14
      %p139 = scmp.lt.s32.totalorder %s14, 5
      %p140 = pnand %p138, %p139
      %p141 = pneg %p140
      // Predicated region
      $region9: #{tpu_custom_call.1} parent=5 // pred_check
        _
      $region10: #{tpu_custom_call.1} parent=5 // pred_check_branch
        %143 = sbr.rel (%p140) target = $region12
      $region11: #{tpu_custom_call.1} parent=5 // pred_region
        %s144 = ssub.s32 %s14, 1
        // Predicated region
        $region13: #{tpu_custom_call.1} parent=11 // pred_check
          %p145 = pneg %p52
        $region14: #{tpu_custom_call.1} parent=11 // pred_check_branch
          %147 = sbr.rel (%p145) target = $region16
        $region15: #{tpu_custom_call.1} parent=11 // pred_region
          %s148 = smul.u32 8, %s23
          %s150 = ssub.s32 2048, 2048
          %151 = vsyncadd [#allocation4], %s150
          %s152 = smul.addr %s148, 2
          %s153 = smul.addr %s152, 128
          %s154 = scalar_lea.hbm %s0, %s153
          %s155 = sshll.u32 [#allocation3], 4
          %s156 = int_to_ptr.vmem [resolvable:$true] %s155
          %161 = dma.hbm_to_vmem [thread:$0]  %s154, 2048, %s156, [#allocation4], 256, 256, 16
        $region16: #{tpu_custom_call.1} parent=11 // pred_fallthru
          _
      $region12: #{tpu_custom_call.1} parent=5 // pred_fallthru
        _
      %p162 = scmp.lt.s32.totalorder %s14, 4
      // Predicated region
      $region17: #{tpu_custom_call.1} parent=5 // pred_check
        %p163 = pneg %p162
      $region18: #{tpu_custom_call.1} parent=5 // pred_check_branch
        %165 = sbr.rel (%p163) target = $region20
      $region19: #{tpu_custom_call.1} parent=5 // pred_region
        // Predicated region
        $region21: #{tpu_custom_call.1} parent=19 // pred_check
          %p166 = pneg %p72
        $region22: #{tpu_custom_call.1} parent=19 // pred_check_branch
          %168 = sbr.rel (%p166) target = $region24
        $region23: #{tpu_custom_call.1} parent=19 // pred_region
          %s169 = sand.u32 %s14, 1
          %s170 = scalar_lea.sflag [#allocation7], %s169
          %s171 = sand.u32 %s62, 1
          %s172 = smul.addr %s171, 1024
          %s173 = scalar_lea.vmem [#allocation6], %s172
          %s174 = smul.u32 4, %s22
          %s176 = ssub.s32 16384, 16384
          %177 = vsyncadd %s170, %s176
          %s178 = smul.addr %s174, 128
          %s179 = scalar_lea.hbm %s1, %s178
          %s180 = sshll.u32 %s173, 4
          %s181 = int_to_ptr.vmem [resolvable:$true] %s180
          %186 = dma.hbm_to_vmem [thread:$0]  %s179, 16384, %s181, %s170, 2048, 512, 32
        $region24: #{tpu_custom_call.1} parent=19 // pred_fallthru
          _
        // Predicated region
        $region25: #{tpu_custom_call.1} parent=19 // pred_check
          %p187 = pneg %p98
        $region26: #{tpu_custom_call.1} parent=19 // pred_check_branch
          %189 = sbr.rel (%p187) target = $region28
        $region27: #{tpu_custom_call.1} parent=19 // pred_region
          %s190 = sand.u32 %s14, 1
          %s191 = scalar_lea.sflag [#allocation7], %s190
          %s192 = sand.u32 %s88, 1
          %s193 = smul.addr %s192, 512
          %s194 = scalar_lea.vmem [#allocation8], %s193
          %s195 = smul.u32 32, %s22
          %s197 = ssub.s32 8192, 8192
          %198 = vsyncadd %s191, %s197
          %s199 = smul.addr %s195, 2
          %s200 = smul.addr %s199, 128
          %s201 = scalar_lea.hbm %s2, %s200
          %s202 = sshll.u32 %s194, 4
          %s203 = int_to_ptr.vmem [resolvable:$true] %s202
          %208 = dma.hbm_to_vmem [thread:$0]  %s201, 8192, %s203, %s191, 256, 256, 16
        $region28: #{tpu_custom_call.1} parent=19 // pred_fallthru
          _
      $region20: #{tpu_custom_call.1} parent=5 // pred_fallthru
        _
      %p209 = scmp.le.s32.totalorder 1, %s14
      %p210 = scmp.lt.s32.totalorder %s14, 5
      %p211 = pnand %p209, %p210
      %p212 = pneg %p211
      // Predicated region
      $region29: #{tpu_custom_call.1} parent=5 // pred_check
        _
      $region30: #{tpu_custom_call.1} parent=5 // pred_check_branch
        %214 = sbr.rel (%p211) target = $region32
      $region31: #{tpu_custom_call.1} parent=5 // pred_region
        %s215 = ssub.s32 %s14, 1
        // Predicated region
        $region33: #{tpu_custom_call.1} parent=31 // pred_check
          %p216 = pneg %p52
        $region34: #{tpu_custom_call.1} parent=31 // pred_check_branch
          %218 = sbr.rel (%p216) target = $region36
        $region35: #{tpu_custom_call.1} parent=31 // pred_region
          %219 = dma.done [#allocation4], 2048
        $region36: #{tpu_custom_call.1} parent=31 // pred_fallthru
          _
        %s220 = sand.u32 %s19, 1
        %s221 = scalar_lea.sflag [#allocation7], %s220
        %s222 = sand.u32 %s65, 1
        %s223 = smul.addr %s222, 1024
        %s224 = scalar_lea.vmem [#allocation6], %s223
        // Predicated region
        $region37: #{tpu_custom_call.1} parent=31 // pred_check
          %p225 = pneg %p78
        $region38: #{tpu_custom_call.1} parent=31 // pred_check_branch
          %227 = sbr.rel (%p225) target = $region40
        $region39: #{tpu_custom_call.1} parent=31 // pred_region
          %228 = dma.done %s221, 16384
        $region40: #{tpu_custom_call.1} parent=31 // pred_fallthru
          _
        %s229 = sand.u32 %s19, 1
        %s230 = scalar_lea.sflag [#allocation7], %s229
        %s231 = sand.u32 %s91, 1
        %s232 = smul.addr %s231, 512
        %s233 = scalar_lea.vmem [#allocation8], %s232
        // Predicated region
        $region41: #{tpu_custom_call.1} parent=31 // pred_check
          %p234 = pneg %p104
        $region42: #{tpu_custom_call.1} parent=31 // pred_check_branch
          %236 = sbr.rel (%p234) target = $region44
        $region43: #{tpu_custom_call.1} parent=31 // pred_region
          %237 = dma.done %s230, 8192
        $region44: #{tpu_custom_call.1} parent=31 // pred_fallthru
          _
        %p238 = pneg %p52
        %p239 = pneg %p49
        %s240 = sand.u32 %s19, 1
        %s241 = scalar_lea.sflag [#allocation7], %s240
        %s242 = sand.u32 %s65, 1
        %s243 = smul.addr %s242, 1024
        %s244 = scalar_lea.vmem [#allocation6], %s243
        %p245 = pneg %p78
        %p246 = pneg %p75
        %s247 = sand.u32 %s19, 1
        %s248 = scalar_lea.sflag [#allocation7], %s247
        %s249 = sand.u32 %s91, 1
        %s250 = smul.addr %s249, 512
        %s251 = scalar_lea.vmem [#allocation8], %s250
        %p252 = pneg %p104
        %p253 = pneg %p101
        %p254 = pneg %p130
        %p255 = pneg %p127
        %s256 = smul.u32 8, %s23
        %s257 = smul.u32 4, %s24
        %s258 = smul.u32 32, %s24
        %s259 = smul.u32 8, %s23
        %p260 = scmp.eq.s32.totalorder %s24, 0
        // Predicated region
        $region45: #{tpu_custom_call.1} parent=31 // pred_check
          %p261 = pneg %p260
        $region46: #{tpu_custom_call.1} parent=31 // pred_check_branch
          %263 = sbr.rel (%p261) target = $region48
        $region47: #{tpu_custom_call.1} parent=31 // pred_region
          %264 = vst [vmem:[#allocation2] sm:$0xff] 0.0
          %265 = vst [vmem:[#allocation2 + $0x8] sm:$0xff] 0.0
          %266 = vst [vmem:[#allocation2 + $0x10] sm:$0xff] 0.0
          %267 = vst [vmem:[#allocation2 + $0x18] sm:$0xff] 0.0
          %268 = vst [vmem:[#allocation2 + $0x20] sm:$0xff] 0.0
          %269 = vst [vmem:[#allocation2 + $0x28] sm:$0xff] 0.0
          %270 = vst [vmem:[#allocation2 + $0x30] sm:$0xff] 0.0
          %271 = vst [vmem:[#allocation2 + $0x38] sm:$0xff] 0.0
          %272 = vst [vmem:[#allocation2 + $0x40] sm:$0xff] 0.0
          %273 = vst [vmem:[#allocation2 + $0x48] sm:$0xff] 0.0
          %274 = vst [vmem:[#allocation2 + $0x50] sm:$0xff] 0.0
          %275 = vst [vmem:[#allocation2 + $0x58] sm:$0xff] 0.0
          %276 = vst [vmem:[#allocation2 + $0x60] sm:$0xff] 0.0
          %277 = vst [vmem:[#allocation2 + $0x68] sm:$0xff] 0.0
          %278 = vst [vmem:[#allocation2 + $0x70] sm:$0xff] 0.0
          %279 = vst [vmem:[#allocation2 + $0x78] sm:$0xff] 0.0
        $region48: #{tpu_custom_call.1} parent=31 // pred_fallthru
          _
        %v280 = vld [vmem:[#allocation3] sm:$0xff]
        %v281 = vld [vmem:[#allocation3 + $0x8] sm:$0xff]
        %v282 = vld [vmem:[#allocation3 + $0x10] sm:$0xff]
        %v283 = vld [vmem:[#allocation3 + $0x18] sm:$0xff]
        %v284 = vld [vmem:[#allocation3 + $0x20] sm:$0xff]
        %v285 = vld [vmem:[#allocation3 + $0x28] sm:$0xff]
        %v286 = vld [vmem:[#allocation3 + $0x30] sm:$0xff]
        %v287 = vld [vmem:[#allocation3 + $0x38] sm:$0xff]
        %v288 = vld [vmem:[#allocation3 + $0x40] sm:$0xff]
        %v289 = vld [vmem:[#allocation3 + $0x48] sm:$0xff]
        %v290 = vld [vmem:[#allocation3 + $0x50] sm:$0xff]
        %v291 = vld [vmem:[#allocation3 + $0x58] sm:$0xff]
        %v292 = vld [vmem:[#allocation3 + $0x60] sm:$0xff]
        %v293 = vld [vmem:[#allocation3 + $0x68] sm:$0xff]
        %v294 = vld [vmem:[#allocation3 + $0x70] sm:$0xff]
        %v295 = vld [vmem:[#allocation3 + $0x78] sm:$0xff]
        %v296 = vld [vmem:[%s224] sm:$0xff]
        %v297 = vld [vmem:[%s224 + $0x8] sm:$0xff]
        %v298 = vld [vmem:[%s224 + $0x10] sm:$0xff]
        %v299 = vld [vmem:[%s224 + $0x18] sm:$0xff]
        %v300 = vld [vmem:[%s224 + $0x20] sm:$0xff]
        %v301 = vld [vmem:[%s224 + $0x28] sm:$0xff]
        %v302 = vld [vmem:[%s224 + $0x30] sm:$0xff]
        %v303 = vld [vmem:[%s224 + $0x38] sm:$0xff]
        %v304 = vld [vmem:[%s224 + $0x40] sm:$0xff]
        %v305 = vld [vmem:[%s224 + $0x48] sm:$0xff]
        %v306 = vld [vmem:[%s224 + $0x50] sm:$0xff]
        %v307 = vld [vmem:[%s224 + $0x58] sm:$0xff]
        %v308 = vld [vmem:[%s224 + $0x60] sm:$0xff]
        %v309 = vld [vmem:[%s224 + $0x68] sm:$0xff]
        %v310 = vld [vmem:[%s224 + $0x70] sm:$0xff]
        %v311 = vld [vmem:[%s224 + $0x78] sm:$0xff]
        %v312 = vld [vmem:[%s224 + $0x80] sm:$0xff]
        %v313 = vld [vmem:[%s224 + $0x88] sm:$0xff]
        %v314 = vld [vmem:[%s224 + $0x90] sm:$0xff]
        %v315 = vld [vmem:[%s224 + $0x98] sm:$0xff]
        %v316 = vld [vmem:[%s224 + $0xa0] sm:$0xff]
        %v317 = vld [vmem:[%s224 + $0xa8] sm:$0xff]
        %v318 = vld [vmem:[%s224 + $0xb0] sm:$0xff]
        %v319 = vld [vmem:[%s224 + $0xb8] sm:$0xff]
        %v320 = vld [vmem:[%s224 + $0xc0] sm:$0xff]
        %v321 = vld [vmem:[%s224 + $0xc8] sm:$0xff]
        %v322 = vld [vmem:[%s224 + $0xd0] sm:$0xff]
        %v323 = vld [vmem:[%s224 + $0xd8] sm:$0xff]
        %v324 = vld [vmem:[%s224 + $0xe0] sm:$0xff]
        %v325 = vld [vmem:[%s224 + $0xe8] sm:$0xff]
        %v326 = vld [vmem:[%s224 + $0xf0] sm:$0xff]
        %v327 = vld [vmem:[%s224 + $0xf8] sm:$0xff]
        %v328 = vld [vmem:[%s224 + $0x100] sm:$0xff]
        %v329 = vld [vmem:[%s224 + $0x108] sm:$0xff]
        %v330 = vld [vmem:[%s224 + $0x110] sm:$0xff]
        %v331 = vld [vmem:[%s224 + $0x118] sm:$0xff]
        %v332 = vld [vmem:[%s224 + $0x120] sm:$0xff]
        %v333 = vld [vmem:[%s224 + $0x128] sm:$0xff]
        %v334 = vld [vmem:[%s224 + $0x130] sm:$0xff]
        %v335 = vld [vmem:[%s224 + $0x138] sm:$0xff]
        %v336 = vld [vmem:[%s224 + $0x140] sm:$0xff]
        %v337 = vld [vmem:[%s224 + $0x148] sm:$0xff]
        %v338 = vld [vmem:[%s224 + $0x150] sm:$0xff]
        %v339 = vld [vmem:[%s224 + $0x158] sm:$0xff]
        %v340 = vld [vmem:[%s224 + $0x160] sm:$0xff]
        %v341 = vld [vmem:[%s224 + $0x168] sm:$0xff]
        %v342 = vld [vmem:[%s224 + $0x170] sm:$0xff]
        %v343 = vld [vmem:[%s224 + $0x178] sm:$0xff]
        %v344 = vld [vmem:[%s224 + $0x180] sm:$0xff]
        %v345 = vld [vmem:[%s224 + $0x188] sm:$0xff]
        %v346 = vld [vmem:[%s224 + $0x190] sm:$0xff]
        %v347 = vld [vmem:[%s224 + $0x198] sm:$0xff]
        %v348 = vld [vmem:[%s224 + $0x1a0] sm:$0xff]
        %v349 = vld [vmem:[%s224 + $0x1a8] sm:$0xff]
        %v350 = vld [vmem:[%s224 + $0x1b0] sm:$0xff]
        %v351 = vld [vmem:[%s224 + $0x1b8] sm:$0xff]
        %v352 = vld [vmem:[%s224 + $0x1c0] sm:$0xff]
        %v353 = vld [vmem:[%s224 + $0x1c8] sm:$0xff]
        %v354 = vld [vmem:[%s224 + $0x1d0] sm:$0xff]
        %v355 = vld [vmem:[%s224 + $0x1d8] sm:$0xff]
        %v356 = vld [vmem:[%s224 + $0x1e0] sm:$0xff]
        %v357 = vld [vmem:[%s224 + $0x1e8] sm:$0xff]
        %v358 = vld [vmem:[%s224 + $0x1f0] sm:$0xff]
        %v359 = vld [vmem:[%s224 + $0x1f8] sm:$0xff]
        %v360 = vld [vmem:[%s224 + $0x200] sm:$0xff]
        %v361 = vld [vmem:[%s224 + $0x208] sm:$0xff]
        %v362 = vld [vmem:[%s224 + $0x210] sm:$0xff]
        %v363 = vld [vmem:[%s224 + $0x218] sm:$0xff]
        %v364 = vld [vmem:[%s224 + $0x220] sm:$0xff]
        %v365 = vld [vmem:[%s224 + $0x228] sm:$0xff]
        %v366 = vld [vmem:[%s224 + $0x230] sm:$0xff]
        %v367 = vld [vmem:[%s224 + $0x238] sm:$0xff]
        %v368 = vld [vmem:[%s224 + $0x240] sm:$0xff]
        %v369 = vld [vmem:[%s224 + $0x248] sm:$0xff]
        %v370 = vld [vmem:[%s224 + $0x250] sm:$0xff]
        %v371 = vld [vmem:[%s224 + $0x258] sm:$0xff]
        %v372 = vld [vmem:[%s224 + $0x260] sm:$0xff]
        %v373 = vld [vmem:[%s224 + $0x268] sm:$0xff]
        %v374 = vld [vmem:[%s224 + $0x270] sm:$0xff]
        %v375 = vld [vmem:[%s224 + $0x278] sm:$0xff]
        %v376 = vld [vmem:[%s224 + $0x280] sm:$0xff]
        %v377 = vld [vmem:[%s224 + $0x288] sm:$0xff]
        %v378 = vld [vmem:[%s224 + $0x290] sm:$0xff]
        %v379 = vld [vmem:[%s224 + $0x298] sm:$0xff]
        %v380 = vld [vmem:[%s224 + $0x2a0] sm:$0xff]
        %v381 = vld [vmem:[%s224 + $0x2a8] sm:$0xff]
        %v382 = vld [vmem:[%s224 + $0x2b0] sm:$0xff]
        %v383 = vld [vmem:[%s224 + $0x2b8] sm:$0xff]
        %v384 = vld [vmem:[%s224 + $0x2c0] sm:$0xff]
        %v385 = vld [vmem:[%s224 + $0x2c8] sm:$0xff]
        %v386 = vld [vmem:[%s224 + $0x2d0] sm:$0xff]
        %v387 = vld [vmem:[%s224 + $0x2d8] sm:$0xff]
        %v388 = vld [vmem:[%s224 + $0x2e0] sm:$0xff]
        %v389 = vld [vmem:[%s224 + $0x2e8] sm:$0xff]
        %v390 = vld [vmem:[%s224 + $0x2f0] sm:$0xff]
        %v391 = vld [vmem:[%s224 + $0x2f8] sm:$0xff]
        %v392 = vld [vmem:[%s224 + $0x300] sm:$0xff]
        %v393 = vld [vmem:[%s224 + $0x308] sm:$0xff]
        %v394 = vld [vmem:[%s224 + $0x310] sm:$0xff]
        %v395 = vld [vmem:[%s224 + $0x318] sm:$0xff]
        %v396 = vld [vmem:[%s224 + $0x320] sm:$0xff]
        %v397 = vld [vmem:[%s224 + $0x328] sm:$0xff]
        %v398 = vld [vmem:[%s224 + $0x330] sm:$0xff]
        %v399 = vld [vmem:[%s224 + $0x338] sm:$0xff]
        %v400 = vld [vmem:[%s224 + $0x340] sm:$0xff]
        %v401 = vld [vmem:[%s224 + $0x348] sm:$0xff]
        %v402 = vld [vmem:[%s224 + $0x350] sm:$0xff]
        %v403 = vld [vmem:[%s224 + $0x358] sm:$0xff]
        %v404 = vld [vmem:[%s224 + $0x360] sm:$0xff]
        %v405 = vld [vmem:[%s224 + $0x368] sm:$0xff]
        %v406 = vld [vmem:[%s224 + $0x370] sm:$0xff]
        %v407 = vld [vmem:[%s224 + $0x378] sm:$0xff]
        %v408 = vld [vmem:[%s224 + $0x380] sm:$0xff]
        %v409 = vld [vmem:[%s224 + $0x388] sm:$0xff]
        %v410 = vld [vmem:[%s224 + $0x390] sm:$0xff]
        %v411 = vld [vmem:[%s224 + $0x398] sm:$0xff]
        %v412 = vld [vmem:[%s224 + $0x3a0] sm:$0xff]
        %v413 = vld [vmem:[%s224 + $0x3a8] sm:$0xff]
        %v414 = vld [vmem:[%s224 + $0x3b0] sm:$0xff]
        %v415 = vld [vmem:[%s224 + $0x3b8] sm:$0xff]
        %v416 = vld [vmem:[%s224 + $0x3c0] sm:$0xff]
        %v417 = vld [vmem:[%s224 + $0x3c8] sm:$0xff]
        %v418 = vld [vmem:[%s224 + $0x3d0] sm:$0xff]
        %v419 = vld [vmem:[%s224 + $0x3d8] sm:$0xff]
        %v420 = vld [vmem:[%s224 + $0x3e0] sm:$0xff]
        %v421 = vld [vmem:[%s224 + $0x3e8] sm:$0xff]
        %v422 = vld [vmem:[%s224 + $0x3f0] sm:$0xff]
        %v423 = vld [vmem:[%s224 + $0x3f8] sm:$0xff]
        %424 = vmatprep.subr.mxu0 %v297
        %425 = vmatpush1.msra.mxu0 %v296
        %426 = vmatprep.subr.mxu0 %v301
        %427 = vmatpush1.msra.mxu0 %v300
        %428 = vmatprep.subr.mxu0 %v305
        %429 = vmatpush1.msra.mxu0 %v304
        %430 = vmatprep.subr.mxu0 %v309
        %431 = vmatpush1.msra.mxu0 %v308
        %432 = vmatprep.subr.mxu0 %v313
        %433 = vmatpush1.msra.mxu0 %v312
        %434 = vmatprep.subr.mxu0 %v317
        %435 = vmatpush1.msra.mxu0 %v316
        %436 = vmatprep.subr.mxu0 %v321
        %437 = vmatpush1.msra.mxu0 %v320
        %438 = vmatprep.subr.mxu0 %v325
        %439 = vmatpush1.msra.mxu0 %v324
        %440 = vmatprep.subr.mxu0 %v329
        %441 = vmatpush1.msra.mxu0 %v328
        %442 = vmatprep.subr.mxu0 %v333
        %443 = vmatpush1.msra.mxu0 %v332
        %444 = vmatprep.subr.mxu0 %v337
        %445 = vmatpush1.msra.mxu0 %v336
        %446 = vmatprep.subr.mxu0 %v341
        %447 = vmatpush1.msra.mxu0 %v340
        %448 = vmatprep.subr.mxu0 %v345
        %449 = vmatpush1.msra.mxu0 %v344
        %450 = vmatprep.subr.mxu0 %v349
        %451 = vmatpush1.msra.mxu0 %v348
        %452 = vmatprep.subr.mxu0 %v353
        %453 = vmatpush1.msra.mxu0 %v352
        %454 = vmatprep.subr.mxu0 %v357
        %455 = vmatpush1.msra.mxu0 %v356
        %456 = vmatprep.subr.mxu0 %v361
        %457 = vmatpush1.msra.mxu0 %v360
        %458 = vmatprep.subr.mxu0 %v365
        %459 = vmatpush1.msra.mxu0 %v364
        %460 = vmatprep.subr.mxu0 %v369
        %461 = vmatpush1.msra.mxu0 %v368
        %462 = vmatprep.subr.mxu0 %v373
        %463 = vmatpush1.msra.mxu0 %v372
        %464 = vmatprep.subr.mxu0 %v377
        %465 = vmatpush1.msra.mxu0 %v376
        %466 = vmatprep.subr.mxu0 %v381
        %467 = vmatpush1.msra.mxu0 %v380
        %468 = vmatprep.subr.mxu0 %v385
        %469 = vmatpush1.msra.mxu0 %v384
        %470 = vmatprep.subr.mxu0 %v389
        %471 = vmatpush1.msra.mxu0 %v388
        %472 = vmatprep.subr.mxu0 %v393
        %473 = vmatpush1.msra.mxu0 %v392
        %474 = vmatprep.subr.mxu0 %v397
        %475 = vmatpush1.msra.mxu0 %v396
        %476 = vmatprep.subr.mxu0 %v401
        %477 = vmatpush1.msra.mxu0 %v400
        %478 = vmatprep.subr.mxu0 %v405
        %479 = vmatpush1.msra.mxu0 %v404
        %480 = vmatprep.subr.mxu0 %v409
        %481 = vmatpush1.msra.mxu0 %v408
        %482 = vmatprep.subr.mxu0 %v413
        %483 = vmatpush1.msra.mxu0 %v412
        %484 = vmatprep.subr.mxu0 %v417
        %485 = vmatpush1.msra.mxu0 %v416
        %486 = vmatprep.subr.mxu0 %v421
        %487 = vmatpush1.msra.mxu0 %v420
        %488 = vmatprep.mubr.f32.mxu0 %v281
        %489 = vmatmul.mubr.f32.gmra.mrb[0].mxu0 %v280
        %v490 = vpop.f32.mrb[0].mxu0
        %v491 = vadd.f32 0.0, %v490
        %v492 = vpop.f32.mrb[0].mxu0
        %v493 = vadd.f32 0.0, %v492
        %494 = vmatprep.mubr.f32.mxu0 %v283
        %495 = vmatmul.mubr.f32.gmra.mrb[0].mxu0 %v282
        %v496 = vpop.f32.mrb[0].mxu0
        %v497 = vadd.f32 0.0, %v496
        %v498 = vpop.f32.mrb[0].mxu0
        %v499 = vadd.f32 0.0, %v498
        %500 = vmatprep.mubr.f32.mxu0 %v285
        %501 = vmatmul.mubr.f32.gmra.mrb[0].mxu0 %v284
        %v502 = vpop.f32.mrb[0].mxu0
        %v503 = vadd.f32 0.0, %v502
        %v504 = vpop.f32.mrb[0].mxu0
        %v505 = vadd.f32 0.0, %v504
        %506 = vmatprep.mubr.f32.mxu0 %v287
        %507 = vmatmul.mubr.f32.gmra.mrb[0].mxu0 %v286
        %v508 = vpop.f32.mrb[0].mxu0
        %v509 = vadd.f32 0.0, %v508
        %v510 = vpop.f32.mrb[0].mxu0
        %v511 = vadd.f32 0.0, %v510
        %512 = vmatprep.mubr.f32.mxu0 %v289
        %513 = vmatmul.mubr.f32.gmra.mrb[0].mxu0 %v288
        %v514 = vpop.f32.mrb[0].mxu0
        %v515 = vadd.f32 0.0, %v514
        %v516 = vpop.f32.mrb[0].mxu0
        %v517 = vadd.f32 0.0, %v516
        %518 = vmatprep.mubr.f32.mxu0 %v291
        %519 = vmatmul.mubr.f32.gmra.mrb[0].mxu0 %v290
        %v520 = vpop.f32.mrb[0].mxu0
        %v521 = vadd.f32 0.0, %v520
        %v522 = vpop.f32.mrb[0].mxu0
        %v523 = vadd.f32 0.0, %v522
        %524 = vmatprep.mubr.f32.mxu0 %v293
        %525 = vmatmul.mubr.f32.gmra.mrb[0].mxu0 %v292
        %v526 = vpop.f32.mrb[0].mxu0
        %v527 = vadd.f32 0.0, %v526
        %v528 = vpop.f32.mrb[0].mxu0
        %v529 = vadd.f32 0.0, %v528
        %530 = vmatprep.mubr.f32.mxu0 %v295
        %531 = vmatmul.mubr.f32.gmra.mrb[0].mxu0 %v294
        %v532 = vpop.f32.mrb[0].mxu0
        %v533 = vadd.f32 0.0, %v532
        %v534 = vpop.f32.mrb[0].mxu0
        %v535 = vadd.f32 0.0, %v534
        %536 = vdwg.mxu0
        %537 = vmatprep.subr.mxu0 %v299
        %538 = vmatpush1.msra.mxu0 %v298
        %539 = vmatprep.subr.mxu0 %v303
        %540 = vmatpush1.msra.mxu0 %v302
        %541 = vmatprep.subr.mxu0 %v307
        %542 = vmatpush1.msra.mxu0 %v306
        %543 = vmatprep.subr.mxu0 %v311
        %544 = vmatpush1.msra.mxu0 %v310
        %545 = vmatprep.subr.mxu0 %v315
        %546 = vmatpush1.msra.mxu0 %v314
        %547 = vmatprep.subr.mxu0 %v319
        %548 = vmatpush1.msra.mxu0 %v318
        %549 = vmatprep.subr.mxu0 %v323
        %550 = vmatpush1.msra.mxu0 %v322
        %551 = vmatprep.subr.mxu0 %v327
        %552 = vmatpush1.msra.mxu0 %v326
        %553 = vmatprep.subr.mxu0 %v331
        %554 = vmatpush1.msra.mxu0 %v330
        %555 = vmatprep.subr.mxu0 %v335
        %556 = vmatpush1.msra.mxu0 %v334
        %557 = vmatprep.subr.mxu0 %v339
        %558 = vmatpush1.msra.mxu0 %v338
        %559 = vmatprep.subr.mxu0 %v343
        %560 = vmatpush1.msra.mxu0 %v342
        %561 = vmatprep.subr.mxu0 %v347
        %562 = vmatpush1.msra.mxu0 %v346
        %563 = vmatprep.subr.mxu0 %v351
        %564 = vmatpush1.msra.mxu0 %v350
        %565 = vmatprep.subr.mxu0 %v355
        %566 = vmatpush1.msra.mxu0 %v354
        %567 = vmatprep.subr.mxu0 %v359
        %568 = vmatpush1.msra.mxu0 %v358
        %569 = vmatprep.subr.mxu0 %v363
        %570 = vmatpush1.msra.mxu0 %v362
        %571 = vmatprep.subr.mxu0 %v367
        %572 = vmatpush1.msra.mxu0 %v366
        %573 = vmatprep.subr.mxu0 %v371
        %574 = vmatpush1.msra.mxu0 %v370
        %575 = vmatprep.subr.mxu0 %v375
        %576 = vmatpush1.msra.mxu0 %v374
        %577 = vmatprep.subr.mxu0 %v379
        %578 = vmatpush1.msra.mxu0 %v378
        %579 = vmatprep.subr.mxu0 %v383
        %580 = vmatpush1.msra.mxu0 %v382
        %581 = vmatprep.subr.mxu0 %v387
        %582 = vmatpush1.msra.mxu0 %v386
        %583 = vmatprep.subr.mxu0 %v391
        %584 = vmatpush1.msra.mxu0 %v390
        %585 = vmatprep.subr.mxu0 %v395
        %586 = vmatpush1.msra.mxu0 %v394
        %587 = vmatprep.subr.mxu0 %v399
        %588 = vmatpush1.msra.mxu0 %v398
        %589 = vmatprep.subr.mxu0 %v403
        %590 = vmatpush1.msra.mxu0 %v402
        %591 = vmatprep.subr.mxu0 %v407
        %592 = vmatpush1.msra.mxu0 %v406
        %593 = vmatprep.subr.mxu0 %v411
        %594 = vmatpush1.msra.mxu0 %v410
        %595 = vmatprep.subr.mxu0 %v415
        %596 = vmatpush1.msra.mxu0 %v414
        %597 = vmatprep.subr.mxu0 %v419
        %598 = vmatpush1.msra.mxu0 %v418
        %599 = vmatprep.subr.mxu0 %v423
        %600 = vmatpush1.msra.mxu0 %v422
        %601 = vmatprep.mubr.f32.mxu0 %v281
        %602 = vmatmul.mubr.f32.gmra.mrb[0].mxu0 %v280
        %v603 = vpop.f32.mrb[0].mxu0
        %v604 = vadd.f32 0.0, %v603
        %v605 = vpop.f32.mrb[0].mxu0
        %v606 = vadd.f32 0.0, %v605
        %607 = vmatprep.mubr.f32.mxu0 %v283
        %608 = vmatmul.mubr.f32.gmra.mrb[0].mxu0 %v282
        %v609 = vpop.f32.mrb[0].mxu0
        %v610 = vadd.f32 0.0, %v609
        %v611 = vpop.f32.mrb[0].mxu0
        %v612 = vadd.f32 0.0, %v611
        %613 = vmatprep.mubr.f32.mxu0 %v285
        %614 = vmatmul.mubr.f32.gmra.mrb[0].mxu0 %v284
        %v615 = vpop.f32.mrb[0].mxu0
        %v616 = vadd.f32 0.0, %v615
        %v617 = vpop.f32.mrb[0].mxu0
        %v618 = vadd.f32 0.0, %v617
        %619 = vmatprep.mubr.f32.mxu0 %v287
        %620 = vmatmul.mubr.f32.gmra.mrb[0].mxu0 %v286
        %v621 = vpop.f32.mrb[0].mxu0
        %v622 = vadd.f32 0.0, %v621
        %v623 = vpop.f32.mrb[0].mxu0
        %v624 = vadd.f32 0.0, %v623
        %625 = vmatprep.mubr.f32.mxu0 %v289
        %626 = vmatmul.mubr.f32.gmra.mrb[0].mxu0 %v288
        %v627 = vpop.f32.mrb[0].mxu0
        %v628 = vadd.f32 0.0, %v627
        %v629 = vpop.f32.mrb[0].mxu0
        %v630 = vadd.f32 0.0, %v629
        %631 = vmatprep.mubr.f32.mxu0 %v291
        %632 = vmatmul.mubr.f32.gmra.mrb[0].mxu0 %v290
        %v633 = vpop.f32.mrb[0].mxu0
        %v634 = vadd.f32 0.0, %v633
        %v635 = vpop.f32.mrb[0].mxu0
        %v636 = vadd.f32 0.0, %v635
        %637 = vmatprep.mubr.f32.mxu0 %v293
        %638 = vmatmul.mubr.f32.gmra.mrb[0].mxu0 %v292
        %v639 = vpop.f32.mrb[0].mxu0
        %v640 = vadd.f32 0.0, %v639
        %v641 = vpop.f32.mrb[0].mxu0
        %v642 = vadd.f32 0.0, %v641
        %643 = vmatprep.mubr.f32.mxu0 %v295
        %644 = vmatmul.mubr.f32.gmra.mrb[0].mxu0 %v294
        %v645 = vpop.f32.mrb[0].mxu0
        %v646 = vadd.f32 0.0, %v645
        %v647 = vpop.f32.mrb[0].mxu0
        %v648 = vadd.f32 0.0, %v647
        %649 = vdwg.mxu0
        %v650 = vxor.u32 %v491, 2147483648
        %v651 = vxor.u32 %v493, 2147483648
        %v652 = vxor.u32 %v497, 2147483648
        %v653 = vxor.u32 %v499, 2147483648
        %v654 = vxor.u32 %v503, 2147483648
        %v655 = vxor.u32 %v505, 2147483648
        %v656 = vxor.u32 %v509, 2147483648
        %v657 = vxor.u32 %v511, 2147483648
        %v658 = vxor.u32 %v515, 2147483648
        %v659 = vxor.u32 %v517, 2147483648
        %v660 = vxor.u32 %v521, 2147483648
        %v661 = vxor.u32 %v523, 2147483648
        %v662 = vxor.u32 %v527, 2147483648
        %v663 = vxor.u32 %v529, 2147483648
        %v664 = vxor.u32 %v533, 2147483648
        %v665 = vxor.u32 %v535, 2147483648
        %v666 = vmul.f32 %v650, 1.442695
        %v667 = vpow.pop %v666
        %v668 = vmul.f32 %v651, 1.442695
        %v669 = vpow.pop %v668
        %v670 = vmul.f32 %v652, 1.442695
        %v671 = vpow.pop %v670
        %v672 = vmul.f32 %v653, 1.442695
        %v673 = vpow.pop %v672
        %v674 = vmul.f32 %v654, 1.442695
        %v675 = vpow.pop %v674
        %v676 = vmul.f32 %v655, 1.442695
        %v677 = vpow.pop %v676
        %v678 = vmul.f32 %v656, 1.442695
        %v679 = vpow.pop %v678
        %v680 = vmul.f32 %v657, 1.442695
        %v681 = vpow.pop %v680
        %v682 = vmul.f32 %v658, 1.442695
        %v683 = vpow.pop %v682
        %v684 = vmul.f32 %v659, 1.442695
        %v685 = vpow.pop %v684
        %v686 = vmul.f32 %v660, 1.442695
        %v687 = vpow.pop %v686
        %v688 = vmul.f32 %v661, 1.442695
        %v689 = vpow.pop %v688
        %v690 = vmul.f32 %v662, 1.442695
        %v691 = vpow.pop %v690
        %v692 = vmul.f32 %v663, 1.442695
        %v693 = vpow.pop %v692
        %v694 = vmul.f32 %v664, 1.442695
        %v695 = vpow.pop %v694
        %v696 = vmul.f32 %v665, 1.442695
        %v697 = vpow.pop %v696
        %v698 = vadd.f32 %v667, 1.0
        %v699 = vadd.f32 %v669, 1.0
        %v700 = vadd.f32 %v671, 1.0
        %v701 = vadd.f32 %v673, 1.0
        %v702 = vadd.f32 %v675, 1.0
        %v703 = vadd.f32 %v677, 1.0
        %v704 = vadd.f32 %v679, 1.0
        %v705 = vadd.f32 %v681, 1.0
        %v706 = vadd.f32 %v683, 1.0
        %v707 = vadd.f32 %v685, 1.0
        %v708 = vadd.f32 %v687, 1.0
        %v709 = vadd.f32 %v689, 1.0
        %v710 = vadd.f32 %v691, 1.0
        %v711 = vadd.f32 %v693, 1.0
        %v712 = vadd.f32 %v695, 1.0
        %v713 = vadd.f32 %v697, 1.0
        %v714 = vrcp.pop %v698
        %v715 = vmul.f32 1.0, %v714
        %v716 = vrcp.pop %v699
        %v717 = vmul.f32 1.0, %v716
        %v718 = vrcp.pop %v700
        %v719 = vmul.f32 1.0, %v718
        %v720 = vrcp.pop %v701
        %v721 = vmul.f32 1.0, %v720
        %v722 = vrcp.pop %v702
        %v723 = vmul.f32 1.0, %v722
        %v724 = vrcp.pop %v703
        %v725 = vmul.f32 1.0, %v724
        %v726 = vrcp.pop %v704
        %v727 = vmul.f32 1.0, %v726
        %v728 = vrcp.pop %v705
        %v729 = vmul.f32 1.0, %v728
        %v730 = vrcp.pop %v706
        %v731 = vmul.f32 1.0, %v730
        %v732 = vrcp.pop %v707
        %v733 = vmul.f32 1.0, %v732
        %v734 = vrcp.pop %v708
        %v735 = vmul.f32 1.0, %v734
        %v736 = vrcp.pop %v709
        %v737 = vmul.f32 1.0, %v736
        %v738 = vrcp.pop %v710
        %v739 = vmul.f32 1.0, %v738
        %v740 = vrcp.pop %v711
        %v741 = vmul.f32 1.0, %v740
        %v742 = vrcp.pop %v712
        %v743 = vmul.f32 1.0, %v742
        %v744 = vrcp.pop %v713
        %v745 = vmul.f32 1.0, %v744
        %v746 = vmul.f32 %v491, %v715
        %v747 = vmul.f32 %v493, %v717
        %v748 = vmul.f32 %v497, %v719
        %v749 = vmul.f32 %v499, %v721
        %v750 = vmul.f32 %v503, %v723
        %v751 = vmul.f32 %v505, %v725
        %v752 = vmul.f32 %v509, %v727
        %v753 = vmul.f32 %v511, %v729
        %v754 = vmul.f32 %v515, %v731
        %v755 = vmul.f32 %v517, %v733
        %v756 = vmul.f32 %v521, %v735
        %v757 = vmul.f32 %v523, %v737
        %v758 = vmul.f32 %v527, %v739
        %v759 = vmul.f32 %v529, %v741
        %v760 = vmul.f32 %v533, %v743
        %v761 = vmul.f32 %v535, %v745
        %v762 = vmul.f32 %v746, %v604
        %v763 = vmul.f32 %v747, %v606
        %v764 = vmul.f32 %v748, %v610
        %v765 = vmul.f32 %v749, %v612
        %v766 = vmul.f32 %v750, %v616
        %v767 = vmul.f32 %v751, %v618
        %v768 = vmul.f32 %v752, %v622
        %v769 = vmul.f32 %v753, %v624
        %v770 = vmul.f32 %v754, %v628
        %v771 = vmul.f32 %v755, %v630
        %v772 = vmul.f32 %v756, %v634
        %v773 = vmul.f32 %v757, %v636
        %v774 = vmul.f32 %v758, %v640
        %v775 = vmul.f32 %v759, %v642
        %v776 = vmul.f32 %v760, %v646
        %v777 = vmul.f32 %v761, %v648
        %v778 = vld [vmem:[#allocation2] sm:$0xff]
        %v779 = vld [vmem:[#allocation2 + $0x8] sm:$0xff]
        %v780 = vld [vmem:[#allocation2 + $0x10] sm:$0xff]
        %v781 = vld [vmem:[#allocation2 + $0x18] sm:$0xff]
        %v782 = vld [vmem:[#allocation2 + $0x20] sm:$0xff]
        %v783 = vld [vmem:[#allocation2 + $0x28] sm:$0xff]
        %v784 = vld [vmem:[#allocation2 + $0x30] sm:$0xff]
        %v785 = vld [vmem:[#allocation2 + $0x38] sm:$0xff]
        %v786 = vld [vmem:[#allocation2 + $0x40] sm:$0xff]
        %v787 = vld [vmem:[#allocation2 + $0x48] sm:$0xff]
        %v788 = vld [vmem:[#allocation2 + $0x50] sm:$0xff]
        %v789 = vld [vmem:[#allocation2 + $0x58] sm:$0xff]
        %v790 = vld [vmem:[#allocation2 + $0x60] sm:$0xff]
        %v791 = vld [vmem:[#allocation2 + $0x68] sm:$0xff]
        %v792 = vld [vmem:[#allocation2 + $0x70] sm:$0xff]
        %v793 = vld [vmem:[#allocation2 + $0x78] sm:$0xff]
        %v794 = vld [vmem:[%s233] sm:$0xff]
        %v795 = vld [vmem:[%s233 + $0x8] sm:$0xff]
        %v796 = vld [vmem:[%s233 + $0x10] sm:$0xff]
        %v797 = vld [vmem:[%s233 + $0x18] sm:$0xff]
        %v798 = vld [vmem:[%s233 + $0x20] sm:$0xff]
        %v799 = vld [vmem:[%s233 + $0x28] sm:$0xff]
        %v800 = vld [vmem:[%s233 + $0x30] sm:$0xff]
        %v801 = vld [vmem:[%s233 + $0x38] sm:$0xff]
        %v802 = vld [vmem:[%s233 + $0x40] sm:$0xff]
        %v803 = vld [vmem:[%s233 + $0x48] sm:$0xff]
        %v804 = vld [vmem:[%s233 + $0x50] sm:$0xff]
        %v805 = vld [vmem:[%s233 + $0x58] sm:$0xff]
        %v806 = vld [vmem:[%s233 + $0x60] sm:$0xff]
        %v807 = vld [vmem:[%s233 + $0x68] sm:$0xff]
        %v808 = vld [vmem:[%s233 + $0x70] sm:$0xff]
        %v809 = vld [vmem:[%s233 + $0x78] sm:$0xff]
        %v810 = vld [vmem:[%s233 + $0x80] sm:$0xff]
        %v811 = vld [vmem:[%s233 + $0x88] sm:$0xff]
        %v812 = vld [vmem:[%s233 + $0x90] sm:$0xff]
        %v813 = vld [vmem:[%s233 + $0x98] sm:$0xff]
        %v814 = vld [vmem:[%s233 + $0xa0] sm:$0xff]
        %v815 = vld [vmem:[%s233 + $0xa8] sm:$0xff]
        %v816 = vld [vmem:[%s233 + $0xb0] sm:$0xff]
        %v817 = vld [vmem:[%s233 + $0xb8] sm:$0xff]
        %v818 = vld [vmem:[%s233 + $0xc0] sm:$0xff]
        %v819 = vld [vmem:[%s233 + $0xc8] sm:$0xff]
        %v820 = vld [vmem:[%s233 + $0xd0] sm:$0xff]
        %v821 = vld [vmem:[%s233 + $0xd8] sm:$0xff]
        %v822 = vld [vmem:[%s233 + $0xe0] sm:$0xff]
        %v823 = vld [vmem:[%s233 + $0xe8] sm:$0xff]
        %v824 = vld [vmem:[%s233 + $0xf0] sm:$0xff]
        %v825 = vld [vmem:[%s233 + $0xf8] sm:$0xff]
        %v826 = vld [vmem:[%s233 + $0x100] sm:$0xff]
        %v827 = vld [vmem:[%s233 + $0x108] sm:$0xff]
        %v828 = vld [vmem:[%s233 + $0x110] sm:$0xff]
        %v829 = vld [vmem:[%s233 + $0x118] sm:$0xff]
        %v830 = vld [vmem:[%s233 + $0x120] sm:$0xff]
        %v831 = vld [vmem:[%s233 + $0x128] sm:$0xff]
        %v832 = vld [vmem:[%s233 + $0x130] sm:$0xff]
        %v833 = vld [vmem:[%s233 + $0x138] sm:$0xff]
        %v834 = vld [vmem:[%s233 + $0x140] sm:$0xff]
        %v835 = vld [vmem:[%s233 + $0x148] sm:$0xff]
        %v836 = vld [vmem:[%s233 + $0x150] sm:$0xff]
        %v837 = vld [vmem:[%s233 + $0x158] sm:$0xff]
        %v838 = vld [vmem:[%s233 + $0x160] sm:$0xff]
        %v839 = vld [vmem:[%s233 + $0x168] sm:$0xff]
        %v840 = vld [vmem:[%s233 + $0x170] sm:$0xff]
        %v841 = vld [vmem:[%s233 + $0x178] sm:$0xff]
        %v842 = vld [vmem:[%s233 + $0x180] sm:$0xff]
        %v843 = vld [vmem:[%s233 + $0x188] sm:$0xff]
        %v844 = vld [vmem:[%s233 + $0x190] sm:$0xff]
        %v845 = vld [vmem:[%s233 + $0x198] sm:$0xff]
        %v846 = vld [vmem:[%s233 + $0x1a0] sm:$0xff]
        %v847 = vld [vmem:[%s233 + $0x1a8] sm:$0xff]
        %v848 = vld [vmem:[%s233 + $0x1b0] sm:$0xff]
        %v849 = vld [vmem:[%s233 + $0x1b8] sm:$0xff]
        %v850 = vld [vmem:[%s233 + $0x1c0] sm:$0xff]
        %v851 = vld [vmem:[%s233 + $0x1c8] sm:$0xff]
        %v852 = vld [vmem:[%s233 + $0x1d0] sm:$0xff]
        %v853 = vld [vmem:[%s233 + $0x1d8] sm:$0xff]
        %v854 = vld [vmem:[%s233 + $0x1e0] sm:$0xff]
        %v855 = vld [vmem:[%s233 + $0x1e8] sm:$0xff]
        %v856 = vld [vmem:[%s233 + $0x1f0] sm:$0xff]
        %v857 = vld [vmem:[%s233 + $0x1f8] sm:$0xff]
        %858 = vmatprep.subr.mxu0 %v795
        %859 = vmatpush1.msra.mxu0 %v794
        %860 = vmatprep.subr.mxu0 %v797
        %861 = vmatpush1.msra.mxu0 %v796
        %862 = vmatprep.subr.mxu0 %v799
        %863 = vmatpush1.msra.mxu0 %v798
        %864 = vmatprep.subr.mxu0 %v801
        %865 = vmatpush1.msra.mxu0 %v800
        %866 = vmatprep.subr.mxu0 %v803
        %867 = vmatpush1.msra.mxu0 %v802
        %868 = vmatprep.subr.mxu0 %v805
        %869 = vmatpush1.msra.mxu0 %v804
        %870 = vmatprep.subr.mxu0 %v807
        %871 = vmatpush1.msra.mxu0 %v806
        %872 = vmatprep.subr.mxu0 %v809
        %873 = vmatpush1.msra.mxu0 %v808
        %874 = vmatprep.subr.mxu0 %v811
        %875 = vmatpush1.msra.mxu0 %v810
        %876 = vmatprep.subr.mxu0 %v813
        %877 = vmatpush1.msra.mxu0 %v812
        %878 = vmatprep.subr.mxu0 %v815
        %879 = vmatpush1.msra.mxu0 %v814
        %880 = vmatprep.subr.mxu0 %v817
        %881 = vmatpush1.msra.mxu0 %v816
        %882 = vmatprep.subr.mxu0 %v819
        %883 = vmatpush1.msra.mxu0 %v818
        %884 = vmatprep.subr.mxu0 %v821
        %885 = vmatpush1.msra.mxu0 %v820
        %886 = vmatprep.subr.mxu0 %v823
        %887 = vmatpush1.msra.mxu0 %v822
        %888 = vmatprep.subr.mxu0 %v825
        %889 = vmatpush1.msra.mxu0 %v824
        %890 = vmatprep.subr.mxu0 %v827
        %891 = vmatpush1.msra.mxu0 %v826
        %892 = vmatprep.subr.mxu0 %v829
        %893 = vmatpush1.msra.mxu0 %v828
        %894 = vmatprep.subr.mxu0 %v831
        %895 = vmatpush1.msra.mxu0 %v830
        %896 = vmatprep.subr.mxu0 %v833
        %897 = vmatpush1.msra.mxu0 %v832
        %898 = vmatprep.subr.mxu0 %v835
        %899 = vmatpush1.msra.mxu0 %v834
        %900 = vmatprep.subr.mxu0 %v837
        %901 = vmatpush1.msra.mxu0 %v836
        %902 = vmatprep.subr.mxu0 %v839
        %903 = vmatpush1.msra.mxu0 %v838
        %904 = vmatprep.subr.mxu0 %v841
        %905 = vmatpush1.msra.mxu0 %v840
        %906 = vmatprep.subr.mxu0 %v843
        %907 = vmatpush1.msra.mxu0 %v842
        %908 = vmatprep.subr.mxu0 %v845
        %909 = vmatpush1.msra.mxu0 %v844
        %910 = vmatprep.subr.mxu0 %v847
        %911 = vmatpush1.msra.mxu0 %v846
        %912 = vmatprep.subr.mxu0 %v849
        %913 = vmatpush1.msra.mxu0 %v848
        %914 = vmatprep.subr.mxu0 %v851
        %915 = vmatpush1.msra.mxu0 %v850
        %916 = vmatprep.subr.mxu0 %v853
        %917 = vmatpush1.msra.mxu0 %v852
        %918 = vmatprep.subr.mxu0 %v855
        %919 = vmatpush1.msra.mxu0 %v854
        %920 = vmatprep.subr.mxu0 %v857
        %921 = vmatpush1.msra.mxu0 %v856
        %922 = vmatprep.mubr.f32.mxu0 %v763
        %923 = vmatmul.mubr.f32.gmra.mrb[0].mxu0 %v762
        %v924 = vpop.f32.mrb[0].mxu0
        %v925 = vadd.f32 0.0, %v924
        %v926 = vpop.f32.mrb[0].mxu0
        %v927 = vadd.f32 0.0, %v926
        %928 = vmatprep.mubr.f32.mxu0 %v765
        %929 = vmatmul.mubr.f32.gmra.mrb[0].mxu0 %v764
        %v930 = vpop.f32.mrb[0].mxu0
        %v931 = vadd.f32 0.0, %v930
        %v932 = vpop.f32.mrb[0].mxu0
        %v933 = vadd.f32 0.0, %v932
        %934 = vmatprep.mubr.f32.mxu0 %v767
        %935 = vmatmul.mubr.f32.gmra.mrb[0].mxu0 %v766
        %v936 = vpop.f32.mrb[0].mxu0
        %v937 = vadd.f32 0.0, %v936
        %v938 = vpop.f32.mrb[0].mxu0
        %v939 = vadd.f32 0.0, %v938
        %940 = vmatprep.mubr.f32.mxu0 %v769
        %941 = vmatmul.mubr.f32.gmra.mrb[0].mxu0 %v768
        %v942 = vpop.f32.mrb[0].mxu0
        %v943 = vadd.f32 0.0, %v942
        %v944 = vpop.f32.mrb[0].mxu0
        %v945 = vadd.f32 0.0, %v944
        %946 = vmatprep.mubr.f32.mxu0 %v771
        %947 = vmatmul.mubr.f32.gmra.mrb[0].mxu0 %v770
        %v948 = vpop.f32.mrb[0].mxu0
        %v949 = vadd.f32 0.0, %v948
        %v950 = vpop.f32.mrb[0].mxu0
        %v951 = vadd.f32 0.0, %v950
        %952 = vmatprep.mubr.f32.mxu0 %v773
        %953 = vmatmul.mubr.f32.gmra.mrb[0].mxu0 %v772
        %v954 = vpop.f32.mrb[0].mxu0
        %v955 = vadd.f32 0.0, %v954
        %v956 = vpop.f32.mrb[0].mxu0
        %v957 = vadd.f32 0.0, %v956
        %958 = vmatprep.mubr.f32.mxu0 %v775
        %959 = vmatmul.mubr.f32.gmra.mrb[0].mxu0 %v774
        %v960 = vpop.f32.mrb[0].mxu0
        %v961 = vadd.f32 0.0, %v960
        %v962 = vpop.f32.mrb[0].mxu0
        %v963 = vadd.f32 0.0, %v962
        %964 = vmatprep.mubr.f32.mxu0 %v777
        %965 = vmatmul.mubr.f32.gmra.mrb[0].mxu0 %v776
        %v966 = vpop.f32.mrb[0].mxu0
        %v967 = vadd.f32 0.0, %v966
        %v968 = vpop.f32.mrb[0].mxu0
        %v969 = vadd.f32 0.0, %v968
        %970 = vdwg.mxu0
        %v971 = vadd.f32 %v778, %v925
        %v972 = vadd.f32 %v779, %v927
        %v973 = vadd.f32 %v780, %v931
        %v974 = vadd.f32 %v781, %v933
        %v975 = vadd.f32 %v782, %v937
        %v976 = vadd.f32 %v783, %v939
        %v977 = vadd.f32 %v784, %v943
        %v978 = vadd.f32 %v785, %v945
        %v979 = vadd.f32 %v786, %v949
        %v980 = vadd.f32 %v787, %v951
        %v981 = vadd.f32 %v788, %v955
        %v982 = vadd.f32 %v789, %v957
        %v983 = vadd.f32 %v790, %v961
        %v984 = vadd.f32 %v791, %v963
        %v985 = vadd.f32 %v792, %v967
        %v986 = vadd.f32 %v793, %v969
        %987 = vst [vmem:[#allocation2] sm:$0xff] %v971
        %988 = vst [vmem:[#allocation2 + $0x8] sm:$0xff] %v972
        %989 = vst [vmem:[#allocation2 + $0x10] sm:$0xff] %v973
        %990 = vst [vmem:[#allocation2 + $0x18] sm:$0xff] %v974
        %991 = vst [vmem:[#allocation2 + $0x20] sm:$0xff] %v975
        %992 = vst [vmem:[#allocation2 + $0x28] sm:$0xff] %v976
        %993 = vst [vmem:[#allocation2 + $0x30] sm:$0xff] %v977
        %994 = vst [vmem:[#allocation2 + $0x38] sm:$0xff] %v978
        %995 = vst [vmem:[#allocation2 + $0x40] sm:$0xff] %v979
        %996 = vst [vmem:[#allocation2 + $0x48] sm:$0xff] %v980
        %997 = vst [vmem:[#allocation2 + $0x50] sm:$0xff] %v981
        %998 = vst [vmem:[#allocation2 + $0x58] sm:$0xff] %v982
        %999 = vst [vmem:[#allocation2 + $0x60] sm:$0xff] %v983
        %1000 = vst [vmem:[#allocation2 + $0x68] sm:$0xff] %v984
        %1001 = vst [vmem:[#allocation2 + $0x70] sm:$0xff] %v985
        %1002 = vst [vmem:[#allocation2 + $0x78] sm:$0xff] %v986
        %p1003 = scmp.eq.s32.totalorder %s24, 3
        // Predicated region
        $region49: #{tpu_custom_call.1} parent=31 // pred_check
          %p1004 = pneg %p1003
        $region50: #{tpu_custom_call.1} parent=31 // pred_check_branch
          %1006 = sbr.rel (%p1004) target = $region52
        $region51: #{tpu_custom_call.1} parent=31 // pred_region
          %v1007 = vld [vmem:[#allocation2] sm:$0xff]
          %v1008 = vld [vmem:[#allocation2 + $0x8] sm:$0xff]
          %v1009 = vld [vmem:[#allocation2 + $0x10] sm:$0xff]
          %v1010 = vld [vmem:[#allocation2 + $0x18] sm:$0xff]
          %v1011 = vld [vmem:[#allocation2 + $0x20] sm:$0xff]
          %v1012 = vld [vmem:[#allocation2 + $0x28] sm:$0xff]
          %v1013 = vld [vmem:[#allocation2 + $0x30] sm:$0xff]
          %v1014 = vld [vmem:[#allocation2 + $0x38] sm:$0xff]
          %v1015 = vld [vmem:[#allocation2 + $0x40] sm:$0xff]
          %v1016 = vld [vmem:[#allocation2 + $0x48] sm:$0xff]
          %v1017 = vld [vmem:[#allocation2 + $0x50] sm:$0xff]
          %v1018 = vld [vmem:[#allocation2 + $0x58] sm:$0xff]
          %v1019 = vld [vmem:[#allocation2 + $0x60] sm:$0xff]
          %v1020 = vld [vmem:[#allocation2 + $0x68] sm:$0xff]
          %v1021 = vld [vmem:[#allocation2 + $0x70] sm:$0xff]
          %v1022 = vld [vmem:[#allocation2 + $0x78] sm:$0xff]
          %1023 = vst [vmem:[#allocation9] sm:$0xff] %v1007
          %1024 = vst [vmem:[#allocation9 + $0x8] sm:$0xff] %v1008
          %1025 = vst [vmem:[#allocation9 + $0x10] sm:$0xff] %v1009
          %1026 = vst [vmem:[#allocation9 + $0x18] sm:$0xff] %v1010
          %1027 = vst [vmem:[#allocation9 + $0x20] sm:$0xff] %v1011
          %1028 = vst [vmem:[#allocation9 + $0x28] sm:$0xff] %v1012
          %1029 = vst [vmem:[#allocation9 + $0x30] sm:$0xff] %v1013
          %1030 = vst [vmem:[#allocation9 + $0x38] sm:$0xff] %v1014
          %1031 = vst [vmem:[#allocation9 + $0x40] sm:$0xff] %v1015
          %1032 = vst [vmem:[#allocation9 + $0x48] sm:$0xff] %v1016
          %1033 = vst [vmem:[#allocation9 + $0x50] sm:$0xff] %v1017
          %1034 = vst [vmem:[#allocation9 + $0x58] sm:$0xff] %v1018
          %1035 = vst [vmem:[#allocation9 + $0x60] sm:$0xff] %v1019
          %1036 = vst [vmem:[#allocation9 + $0x68] sm:$0xff] %v1020
          %1037 = vst [vmem:[#allocation9 + $0x70] sm:$0xff] %v1021
          %1038 = vst [vmem:[#allocation9 + $0x78] sm:$0xff] %v1022
        $region52: #{tpu_custom_call.1} parent=31 // pred_fallthru
          _
        // Predicated region
        $region53: #{tpu_custom_call.1} parent=31 // pred_check
          %p1039 = pneg %p127
        $region54: #{tpu_custom_call.1} parent=31 // pred_check_branch
          %1041 = sbr.rel (%p1039) target = $region56
        $region55: #{tpu_custom_call.1} parent=31 // pred_region
          %s1042 = smul.u32 8, %s23
          %s1044 = ssub.s32 2048, 2048
          %1045 = vsyncadd [#allocation5], %s1044
          %s1046 = smul.addr %s1042, 2
          %s1047 = smul.addr %s1046, 128
          %s1048 = scalar_lea.hbm %s3, %s1047
          %s1049 = sshll.u32 [#allocation9], 4
          %s1050 = int_to_ptr.vmem [resolvable:$true] %s1049
          %1055 = dma.vmem_to_hbm [thread:$0]  %s1050, 2048, %s1048, [#allocation5], 256, 256, 16
        $region56: #{tpu_custom_call.1} parent=31 // pred_fallthru
          _
        // Predicated region
        $region57: #{tpu_custom_call.1} parent=31 // pred_check
          %p1056 = pneg %p127
        $region58: #{tpu_custom_call.1} parent=31 // pred_check_branch
          %1058 = sbr.rel (%p1056) target = $region60
        $region59: #{tpu_custom_call.1} parent=31 // pred_region
          %1059 = dma.done [#allocation5], 2048
        $region60: #{tpu_custom_call.1} parent=31 // pred_fallthru
          _
      $region32: #{tpu_custom_call.1} parent=5 // pred_fallthru
        _
      %p1060 = scmp.le.s32.totalorder 2, %s14
      // Predicated region
      $region61: #{tpu_custom_call.1} parent=5 // pred_check
        %p1061 = pneg %p1060
      $region62: #{tpu_custom_call.1} parent=5 // pred_check_branch
        %1063 = sbr.rel (%p1061) target = $region64
      $region63: #{tpu_custom_call.1} parent=5 // pred_region
        %s1064 = ssub.s32 %s14, 2
      $region64: #{tpu_custom_call.1} parent=5 // pred_fallthru
        _
    $region6: #{tpu_custom_call.1} parent=1 // loop_footer
      %s18 = sadd.s32 1, %s14
    $region7: #{tpu_custom_call.1} parent=1 // loop_footer_branch
      %13 = sbr.rel target = $region3
    $region8: #{tpu_custom_call.1} parent=1 // loop_exit
      _
    %1065 = vsyncpa [#allocation4], 1
    %s1066 = scalar_lea.sflag [#allocation4], 1
    %1067 = vsyncpa %s1066, 1
    %1068 = vsyncpa [#allocation7], 1
    %s1069 = scalar_lea.sflag [#allocation7], 1
    %1070 = vsyncpa %s1069, 1
    %1071 = vsyncpa [#allocation5], 1
    %s1072 = scalar_lea.sflag [#allocation5], 1
    %1073 = vsyncpa %s1072, 1

</llo_original>
